<compile_context>
chip_gen: v5e
topology: v5e:2x2
jax: 0.10.0
libtpu: 0.0.40
codegen_flags: <defaults>
</compile_context>

<pallas_src>
import functools
import math

import numpy as np
import jax
import jax.numpy as jnp
from jax import lax
from jax.experimental import pallas as pl
from jax.experimental.pallas import tpu as pltpu


# ---------------------------------------------------------------------------
# Fused per-batch kernel: LayerNorm -> qkv -> masked softmax attention -> to_out
# ---------------------------------------------------------------------------
def _fused_attn_kernel(x_ref, bias_ref, g_ref, b_ref,
                       wq_ref, wk_ref, wv_ref, wo_ref, bo_ref,
                       o_ref, *, heads, dim_head, scale):
    # --- LayerNorm prologue (eps matches nn.LayerNorm default) ------------------
    x = x_ref[...].astype(jnp.float32)                        # (M_pad, din)
    mu = jnp.mean(x, axis=-1, keepdims=True)
    var = jnp.mean((x - mu) ** 2, axis=-1, keepdims=True)
    xn = (x - mu) * lax.rsqrt(var + 1e-5)
    xn = xn * g_ref[...] + b_ref[...]

    # --- q/k/v projections at full width H*dim_head (MXU N-dim = 64, not 16) ----
    # NOTE: keep f32 end-to-end (safe on v5e VPU); on v6e/v7x the MXU inputs could
    # be cast to bf16 for extra throughput at larger shapes.
    q = jnp.dot(xn, wq_ref[...], preferred_element_type=jnp.float32)   # (M_pad, H*dh)
    k = jnp.dot(xn, wk_ref[...], preferred_element_type=jnp.float32)
    v = jnp.dot(xn, wv_ref[...], preferred_element_type=jnp.float32)

    bias = bias_ref[...]                                      # (1, M_pad), {0, -1e30}

    # --- per-head attention, statically unrolled (H is small) -------------------
    outs = []
    for h in range(heads):
        sl = slice(h * dim_head, (h + 1) * dim_head)
        qh, kh, vh = q[:, sl], k[:, sl], v[:, sl]
        # contract on the last dim of both q and k -> no k transpose materialized
        s = lax.dot_general(qh, kh, (((1,), (1,)), ((), ())),
                            preferred_element_type=jnp.float32)         # (M_pad, M_pad)
        s = s * scale + bias                     # finite large-negative key mask
        m = jnp.max(s, axis=-1, keepdims=True)
        p = jnp.exp(s - m)
        inv = pl.reciprocal(jnp.sum(p, axis=-1, keepdims=True), approx=True)
        a = p * inv
        outs.append(jnp.dot(a, vh, preferred_element_type=jnp.float32))  # (M_pad, dh)

    cat = jnp.concatenate(outs, axis=-1)                      # (M_pad, H*dh) lane-dense
    # --- to_out epilogue ---------------------------------------------------------
    o_ref[...] = (jnp.dot(cat, wo_ref[...], preferred_element_type=jnp.float32)
                  + bo_ref[...])


def fused_attention(x, bias, gamma, beta, wq, wk, wv, w_out, b_out,
                    *, heads, dim_head):
    B, M_pad, din = x.shape
    dim = heads * dim_head
    kernel = functools.partial(_fused_attn_kernel, heads=heads,
                               dim_head=dim_head, scale=float(dim_head) ** -0.5)
    const_spec = lambda shape: pl.BlockSpec(shape, lambda b: (0,) * len(shape))
    return pl.pallas_call(
        kernel,
        out_shape=jax.ShapeDtypeStruct((B, M_pad, dim), jnp.float32),
        grid=(B,),
        in_specs=[
            pl.BlockSpec((None, M_pad, din), lambda b: (b, 0, 0)),   # dense batch x
            pl.BlockSpec((None, 1, M_pad), lambda b: (b, 0, 0)),     # key-mask bias
            const_spec((1, din)),                                    # LN gamma
            const_spec((1, din)),                                    # LN beta
            const_spec((din, dim)),                                  # Wq
            const_spec((din, dim)),                                  # Wk
            const_spec((din, dim)),                                  # Wv
            const_spec((dim, dim)),                                  # W_out
            const_spec((1, dim)),                                    # b_out
        ],
        out_specs=pl.BlockSpec((None, M_pad, dim), lambda b: (b, 0, 0)),
        compiler_params=pltpu.CompilerParams(
            dimension_semantics=("parallel",)),                      # shardable on 2-TC chips
    )(x, bias, gamma.reshape(1, din), beta.reshape(1, din),
      wq, wk, wv, w_out, b_out.reshape(1, dim))


# ---------------------------------------------------------------------------
# SwitchableAttention.forward (groups=None path)
# ---------------------------------------------------------------------------
def switchable_attention_forward(z, src, params, *, heads, dim_head):
    src = np.asarray(src)
    assert np.all(np.diff(src) >= 0), "src must be sorted (to_dense_batch convention)"
    N, din = z.shape
    dim = heads * dim_head
    B = int(src.max()) + 1
    counts = np.bincount(src, minlength=B)
    M = int(counts.max())
    M_pad = max(8, -(-M // 8) * 8)            # pad rows to a sublane multiple

    # branch selection identical to the PyTorch module (performer default nb_features)
    nb_features = int(dim_head * math.log(dim_head))
    pf_threshold = (nb_features * (nb_features + dim_head)) ** 0.5 + nb_features
    if M > pf_threshold:
        # TODO(synk): Performer FastAttention path not implemented.
        raise NotImplementedError("linear (Performer) attention branch not implemented")

    # to_dense_batch glue (raw z; LayerNorm happens inside the fused kernel).
    pos = np.concatenate([np.arange(c) for c in counts]).astype(np.int32)
    x = jnp.zeros((B, M_pad, din), jnp.float32).at[src, pos].set(z)
    mask = np.zeros((B, M_pad), dtype=bool)
    mask[src, pos] = True
    # Finite large-negative bias (instead of -inf) -> no inf arithmetic / NaN risk.
    bias = jnp.asarray(np.where(mask, 0.0, -1e30), dtype=np.float32).reshape(B, 1, M_pad)

    # Single fused kernel: LN + qkv + masked softmax attention + to_out.
    y = fused_attention(x, bias,
                        params["ln_gamma"], params["ln_beta"],
                        params["wq"], params["wk"], params["wv"],
                        params["w_out"], params["b_out"],
                        heads=heads, dim_head=dim_head)        # (B, M_pad, dim)

    # Gather valid rows back to node order (== out[mask]; to_out already applied,
    # which commutes with the row gather).
    return y[src, pos]                                         # (N, dim)


# ---------------------------------------------------------------------------
if __name__ == "__main__":
    # small, forward-consistent shapes
    N, din, heads, dim_head = 16, 32, 4, 16
    dim = heads * dim_head
    src = np.array([0] * 6 + [1] * 4 + [2] * 6, dtype=np.int32)   # sorted batch ids, B=3, M=6

    key = jax.random.PRNGKey(0)
    kz, kg, kb, kq, kk, kv, ko, kob = jax.random.split(key, 8)

    z = jax.random.normal(kz, (N, din), jnp.float32)

    # deterministic synthetic parameters (weights stored as (in, out); y = x @ W + b)
    params = dict(
        ln_gamma=1.0 + 0.1 * jax.random.normal(kg, (din,), jnp.float32),
        ln_beta=0.1 * jax.random.normal(kb, (din,), jnp.float32),
        wq=0.05 * jax.random.normal(kq, (din, dim), jnp.float32),
        wk=0.05 * jax.random.normal(kk, (din, dim), jnp.float32),
        wv=0.05 * jax.random.normal(kv, (din, dim), jnp.float32),
        w_out=0.05 * jax.random.normal(ko, (dim, dim), jnp.float32),
        b_out=0.1 * jax.random.normal(kob, (dim,), jnp.float32),
    )

    h = switchable_attention_forward(z, src, params, heads=heads, dim_head=dim_head)
    h = jax.block_until_ready(h)

    assert h.shape == (N, dim), h.shape
    assert bool(jnp.all(jnp.isfinite(h)))
    print("KERNEL_OK")
</pallas_src>

<mosaic_0001>
module attributes {stable_mosaic.version = 11 : i64} {
  func.func @_fused_attn_kernel(%arg0: i32, %arg1: memref<1x8x32xf32, #tpu.memory_space<vmem>>, %arg2: memref<1x1x8xf32, #tpu.memory_space<vmem>>, %arg3: memref<1x32xf32, #tpu.memory_space<vmem>>, %arg4: memref<1x32xf32, #tpu.memory_space<vmem>>, %arg5: memref<32x64xf32, #tpu.memory_space<vmem>>, %arg6: memref<32x64xf32, #tpu.memory_space<vmem>>, %arg7: memref<32x64xf32, #tpu.memory_space<vmem>>, %arg8: memref<64x64xf32, #tpu.memory_space<vmem>>, %arg9: memref<1x64xf32, #tpu.memory_space<vmem>>, %arg10: memref<1x8x64xf32, #tpu.memory_space<vmem>>) attributes {dimension_semantics = [#tpu.dimension_semantics<parallel>], iteration_bounds = array<i64: 3>, scalar_prefetch = 0 : i64, scratch_operands = 0 : i64, tpu.core_type = #tpu.core_type<tc>, window_params = [{transform_indices = @transform_0, window_bounds = array<i64: 1, 8, 32>}, {transform_indices = @transform_1, window_bounds = array<i64: 1, 1, 8>}, {pipeline_mode = #tpu.pipeline_mode<synchronous>, transform_indices = @transform_2, window_bounds = array<i64: 1, 32>}, {pipeline_mode = #tpu.pipeline_mode<synchronous>, transform_indices = @transform_3, window_bounds = array<i64: 1, 32>}, {pipeline_mode = #tpu.pipeline_mode<synchronous>, transform_indices = @transform_4, window_bounds = array<i64: 32, 64>}, {pipeline_mode = #tpu.pipeline_mode<synchronous>, transform_indices = @transform_5, window_bounds = array<i64: 32, 64>}, {pipeline_mode = #tpu.pipeline_mode<synchronous>, transform_indices = @transform_6, window_bounds = array<i64: 32, 64>}, {pipeline_mode = #tpu.pipeline_mode<synchronous>, transform_indices = @transform_7, window_bounds = array<i64: 64, 64>}, {pipeline_mode = #tpu.pipeline_mode<synchronous>, transform_indices = @transform_8, window_bounds = array<i64: 1, 64>}, {transform_indices = @transform_9, window_bounds = array<i64: 1, 8, 64>}]} {
    %c0 = arith.constant 0 : index
    %c0_0 = arith.constant 0 : index
    %c0_1 = arith.constant 0 : index
    %0 = vector.load %arg1[%c0, %c0_0, %c0_1] : memref<1x8x32xf32, #tpu.memory_space<vmem>>, vector<1x8x32xf32>
    %1 = vector.shape_cast %0 : vector<1x8x32xf32> to vector<8x32xf32>
    %cst = arith.constant dense<0.000000e+00> : vector<8xf32>
    %2 = vector.multi_reduction <add>, %1, %cst [1] : vector<8x32xf32> to vector<8xf32>
    %3 = vector.shape_cast %2 : vector<8xf32> to vector<8x1xf32>
    %cst_2 = arith.constant 3.200000e+01 : f32
    %4 = vector.broadcast %cst_2 : f32 to vector<8x1xf32>
    %5 = arith.divf %3, %4 : vector<8x1xf32>
    %6 = vector.broadcast %5 : vector<8x1xf32> to vector<8x32xf32>
    %7 = arith.subf %1, %6 : vector<8x32xf32>
    %8 = arith.mulf %7, %7 : vector<8x32xf32>
    %cst_3 = arith.constant dense<0.000000e+00> : vector<8xf32>
    %9 = vector.multi_reduction <add>, %8, %cst_3 [1] : vector<8x32xf32> to vector<8xf32>
    %10 = vector.shape_cast %9 : vector<8xf32> to vector<8x1xf32>
    %cst_4 = arith.constant 3.200000e+01 : f32
    %11 = vector.broadcast %cst_4 : f32 to vector<8x1xf32>
    %12 = arith.divf %10, %11 : vector<8x1xf32>
    %13 = vector.broadcast %5 : vector<8x1xf32> to vector<8x32xf32>
    %14 = arith.subf %1, %13 : vector<8x32xf32>
    %cst_5 = arith.constant 9.99999974E-6 : f32
    %15 = vector.broadcast %cst_5 : f32 to vector<8x1xf32>
    %16 = arith.addf %12, %15 : vector<8x1xf32>
    %17 = math.rsqrt %16 : vector<8x1xf32>
    %18 = vector.broadcast %17 : vector<8x1xf32> to vector<8x32xf32>
    %19 = arith.mulf %14, %18 : vector<8x32xf32>
    %c0_6 = arith.constant 0 : index
    %c0_7 = arith.constant 0 : index
    %20 = vector.load %arg3[%c0_6, %c0_7] : memref<1x32xf32, #tpu.memory_space<vmem>>, vector<1x32xf32>
    %21 = vector.broadcast %20 : vector<1x32xf32> to vector<8x32xf32>
    %22 = arith.mulf %19, %21 : vector<8x32xf32>
    %c0_8 = arith.constant 0 : index
    %c0_9 = arith.constant 0 : index
    %23 = vector.load %arg4[%c0_8, %c0_9] : memref<1x32xf32, #tpu.memory_space<vmem>>, vector<1x32xf32>
    %24 = vector.broadcast %23 : vector<1x32xf32> to vector<8x32xf32>
    %25 = arith.addf %22, %24 : vector<8x32xf32>
    %c0_10 = arith.constant 0 : index
    %c0_11 = arith.constant 0 : index
    %26 = vector.load %arg5[%c0_10, %c0_11] : memref<32x64xf32, #tpu.memory_space<vmem>>, vector<32x64xf32>
    %cst_12 = arith.constant dense<0.000000e+00> : vector<8x64xf32>
    %27 = tpu.matmul %25, %26, %cst_12 {dimension_numbers = #tpu.dot_dimension_numbers<[1], [0], [0], [1], [0, 0, 1, 1], [], []>} : vector<8x32xf32>, vector<32x64xf32>, vector<8x64xf32> -> vector<8x64xf32>
    %c0_13 = arith.constant 0 : index
    %c0_14 = arith.constant 0 : index
    %28 = vector.load %arg6[%c0_13, %c0_14] : memref<32x64xf32, #tpu.memory_space<vmem>>, vector<32x64xf32>
    %cst_15 = arith.constant dense<0.000000e+00> : vector<8x64xf32>
    %29 = tpu.matmul %25, %28, %cst_15 {dimension_numbers = #tpu.dot_dimension_numbers<[1], [0], [0], [1], [0, 0, 1, 1], [], []>} : vector<8x32xf32>, vector<32x64xf32>, vector<8x64xf32> -> vector<8x64xf32>
    %c0_16 = arith.constant 0 : index
    %c0_17 = arith.constant 0 : index
    %30 = vector.load %arg7[%c0_16, %c0_17] : memref<32x64xf32, #tpu.memory_space<vmem>>, vector<32x64xf32>
    %cst_18 = arith.constant dense<0.000000e+00> : vector<8x64xf32>
    %31 = tpu.matmul %25, %30, %cst_18 {dimension_numbers = #tpu.dot_dimension_numbers<[1], [0], [0], [1], [0, 0, 1, 1], [], []>} : vector<8x32xf32>, vector<32x64xf32>, vector<8x64xf32> -> vector<8x64xf32>
    %c0_19 = arith.constant 0 : index
    %c0_20 = arith.constant 0 : index
    %c0_21 = arith.constant 0 : index
    %32 = vector.load %arg2[%c0_19, %c0_20, %c0_21] : memref<1x1x8xf32, #tpu.memory_space<vmem>>, vector<1x1x8xf32>
    %33 = vector.shape_cast %32 : vector<1x1x8xf32> to vector<1x8xf32>
    %34 = vector.extract_strided_slice %27 {offsets = [0, 0], sizes = [8, 16], strides = [1, 1]} : vector<8x64xf32> to vector<8x16xf32>
    %35 = vector.extract_strided_slice %29 {offsets = [0, 0], sizes = [8, 16], strides = [1, 1]} : vector<8x64xf32> to vector<8x16xf32>
    %36 = vector.extract_strided_slice %31 {offsets = [0, 0], sizes = [8, 16], strides = [1, 1]} : vector<8x64xf32> to vector<8x16xf32>
    %cst_22 = arith.constant dense<0.000000e+00> : vector<8x8xf32>
    %37 = tpu.matmul %34, %35, %cst_22 {dimension_numbers = #tpu.dot_dimension_numbers<[1], [1], [0], [0], [0, 0, 1, 0], [], []>} : vector<8x16xf32>, vector<8x16xf32>, vector<8x8xf32> -> vector<8x8xf32>
    %cst_23 = arith.constant 2.500000e-01 : f32
    %38 = vector.broadcast %cst_23 : f32 to vector<8x8xf32>
    %39 = arith.mulf %37, %38 : vector<8x8xf32>
    %40 = vector.broadcast %33 : vector<1x8xf32> to vector<8x8xf32>
    %41 = arith.addf %39, %40 : vector<8x8xf32>
    %cst_24 = arith.constant dense<0xFF800000> : vector<8xf32>
    %42 = vector.multi_reduction <maximumf>, %41, %cst_24 [1] : vector<8x8xf32> to vector<8xf32>
    %43 = vector.shape_cast %42 : vector<8xf32> to vector<8x1xf32>
    %44 = vector.broadcast %43 : vector<8x1xf32> to vector<8x8xf32>
    %45 = arith.subf %41, %44 : vector<8x8xf32>
    %46 = math.exp %45 : vector<8x8xf32>
    %cst_25 = arith.constant dense<0.000000e+00> : vector<8xf32>
    %47 = vector.multi_reduction <add>, %46, %cst_25 [1] : vector<8x8xf32> to vector<8xf32>
    %48 = vector.shape_cast %47 : vector<8xf32> to vector<8x1xf32>
    %49 = tpu.reciprocal %48 {approx = true} : vector<8x1xf32> -> vector<8x1xf32>
    %50 = vector.broadcast %49 : vector<8x1xf32> to vector<8x8xf32>
    %51 = arith.mulf %46, %50 : vector<8x8xf32>
    %cst_26 = arith.constant dense<0.000000e+00> : vector<8x16xf32>
    %52 = tpu.matmul %51, %36, %cst_26 {dimension_numbers = #tpu.dot_dimension_numbers<[1], [0], [0], [1], [0, 0, 1, 1], [], []>} : vector<8x8xf32>, vector<8x16xf32>, vector<8x16xf32> -> vector<8x16xf32>
    %53 = vector.extract_strided_slice %27 {offsets = [0, 16], sizes = [8, 16], strides = [1, 1]} : vector<8x64xf32> to vector<8x16xf32>
    %54 = vector.extract_strided_slice %29 {offsets = [0, 16], sizes = [8, 16], strides = [1, 1]} : vector<8x64xf32> to vector<8x16xf32>
    %55 = vector.extract_strided_slice %31 {offsets = [0, 16], sizes = [8, 16], strides = [1, 1]} : vector<8x64xf32> to vector<8x16xf32>
    %cst_27 = arith.constant dense<0.000000e+00> : vector<8x8xf32>
    %56 = tpu.matmul %53, %54, %cst_27 {dimension_numbers = #tpu.dot_dimension_numbers<[1], [1], [0], [0], [0, 0, 1, 0], [], []>} : vector<8x16xf32>, vector<8x16xf32>, vector<8x8xf32> -> vector<8x8xf32>
    %cst_28 = arith.constant 2.500000e-01 : f32
    %57 = vector.broadcast %cst_28 : f32 to vector<8x8xf32>
    %58 = arith.mulf %56, %57 : vector<8x8xf32>
    %59 = vector.broadcast %33 : vector<1x8xf32> to vector<8x8xf32>
    %60 = arith.addf %58, %59 : vector<8x8xf32>
    %cst_29 = arith.constant dense<0xFF800000> : vector<8xf32>
    %61 = vector.multi_reduction <maximumf>, %60, %cst_29 [1] : vector<8x8xf32> to vector<8xf32>
    %62 = vector.shape_cast %61 : vector<8xf32> to vector<8x1xf32>
    %63 = vector.broadcast %62 : vector<8x1xf32> to vector<8x8xf32>
    %64 = arith.subf %60, %63 : vector<8x8xf32>
    %65 = math.exp %64 : vector<8x8xf32>
    %cst_30 = arith.constant dense<0.000000e+00> : vector<8xf32>
    %66 = vector.multi_reduction <add>, %65, %cst_30 [1] : vector<8x8xf32> to vector<8xf32>
    %67 = vector.shape_cast %66 : vector<8xf32> to vector<8x1xf32>
    %68 = tpu.reciprocal %67 {approx = true} : vector<8x1xf32> -> vector<8x1xf32>
    %69 = vector.broadcast %68 : vector<8x1xf32> to vector<8x8xf32>
    %70 = arith.mulf %65, %69 : vector<8x8xf32>
    %cst_31 = arith.constant dense<0.000000e+00> : vector<8x16xf32>
    %71 = tpu.matmul %70, %55, %cst_31 {dimension_numbers = #tpu.dot_dimension_numbers<[1], [0], [0], [1], [0, 0, 1, 1], [], []>} : vector<8x8xf32>, vector<8x16xf32>, vector<8x16xf32> -> vector<8x16xf32>
    %72 = vector.extract_strided_slice %27 {offsets = [0, 32], sizes = [8, 16], strides = [1, 1]} : vector<8x64xf32> to vector<8x16xf32>
    %73 = vector.extract_strided_slice %29 {offsets = [0, 32], sizes = [8, 16], strides = [1, 1]} : vector<8x64xf32> to vector<8x16xf32>
    %74 = vector.extract_strided_slice %31 {offsets = [0, 32], sizes = [8, 16], strides = [1, 1]} : vector<8x64xf32> to vector<8x16xf32>
    %cst_32 = arith.constant dense<0.000000e+00> : vector<8x8xf32>
    %75 = tpu.matmul %72, %73, %cst_32 {dimension_numbers = #tpu.dot_dimension_numbers<[1], [1], [0], [0], [0, 0, 1, 0], [], []>} : vector<8x16xf32>, vector<8x16xf32>, vector<8x8xf32> -> vector<8x8xf32>
    %cst_33 = arith.constant 2.500000e-01 : f32
    %76 = vector.broadcast %cst_33 : f32 to vector<8x8xf32>
    %77 = arith.mulf %75, %76 : vector<8x8xf32>
    %78 = vector.broadcast %33 : vector<1x8xf32> to vector<8x8xf32>
    %79 = arith.addf %77, %78 : vector<8x8xf32>
    %cst_34 = arith.constant dense<0xFF800000> : vector<8xf32>
    %80 = vector.multi_reduction <maximumf>, %79, %cst_34 [1] : vector<8x8xf32> to vector<8xf32>
    %81 = vector.shape_cast %80 : vector<8xf32> to vector<8x1xf32>
    %82 = vector.broadcast %81 : vector<8x1xf32> to vector<8x8xf32>
    %83 = arith.subf %79, %82 : vector<8x8xf32>
    %84 = math.exp %83 : vector<8x8xf32>
    %cst_35 = arith.constant dense<0.000000e+00> : vector<8xf32>
    %85 = vector.multi_reduction <add>, %84, %cst_35 [1] : vector<8x8xf32> to vector<8xf32>
    %86 = vector.shape_cast %85 : vector<8xf32> to vector<8x1xf32>
    %87 = tpu.reciprocal %86 {approx = true} : vector<8x1xf32> -> vector<8x1xf32>
    %88 = vector.broadcast %87 : vector<8x1xf32> to vector<8x8xf32>
    %89 = arith.mulf %84, %88 : vector<8x8xf32>
    %cst_36 = arith.constant dense<0.000000e+00> : vector<8x16xf32>
    %90 = tpu.matmul %89, %74, %cst_36 {dimension_numbers = #tpu.dot_dimension_numbers<[1], [0], [0], [1], [0, 0, 1, 1], [], []>} : vector<8x8xf32>, vector<8x16xf32>, vector<8x16xf32> -> vector<8x16xf32>
    %91 = vector.extract_strided_slice %27 {offsets = [0, 48], sizes = [8, 16], strides = [1, 1]} : vector<8x64xf32> to vector<8x16xf32>
    %92 = vector.extract_strided_slice %29 {offsets = [0, 48], sizes = [8, 16], strides = [1, 1]} : vector<8x64xf32> to vector<8x16xf32>
    %93 = vector.extract_strided_slice %31 {offsets = [0, 48], sizes = [8, 16], strides = [1, 1]} : vector<8x64xf32> to vector<8x16xf32>
    %cst_37 = arith.constant dense<0.000000e+00> : vector<8x8xf32>
    %94 = tpu.matmul %91, %92, %cst_37 {dimension_numbers = #tpu.dot_dimension_numbers<[1], [1], [0], [0], [0, 0, 1, 0], [], []>} : vector<8x16xf32>, vector<8x16xf32>, vector<8x8xf32> -> vector<8x8xf32>
    %cst_38 = arith.constant 2.500000e-01 : f32
    %95 = vector.broadcast %cst_38 : f32 to vector<8x8xf32>
    %96 = arith.mulf %94, %95 : vector<8x8xf32>
    %97 = vector.broadcast %33 : vector<1x8xf32> to vector<8x8xf32>
    %98 = arith.addf %96, %97 : vector<8x8xf32>
    %cst_39 = arith.constant dense<0xFF800000> : vector<8xf32>
    %99 = vector.multi_reduction <maximumf>, %98, %cst_39 [1] : vector<8x8xf32> to vector<8xf32>
    %100 = vector.shape_cast %99 : vector<8xf32> to vector<8x1xf32>
    %101 = vector.broadcast %100 : vector<8x1xf32> to vector<8x8xf32>
    %102 = arith.subf %98, %101 : vector<8x8xf32>
    %103 = math.exp %102 : vector<8x8xf32>
    %cst_40 = arith.constant dense<0.000000e+00> : vector<8xf32>
    %104 = vector.multi_reduction <add>, %103, %cst_40 [1] : vector<8x8xf32> to vector<8xf32>
    %105 = vector.shape_cast %104 : vector<8xf32> to vector<8x1xf32>
    %106 = tpu.reciprocal %105 {approx = true} : vector<8x1xf32> -> vector<8x1xf32>
    %107 = vector.broadcast %106 : vector<8x1xf32> to vector<8x8xf32>
    %108 = arith.mulf %103, %107 : vector<8x8xf32>
    %cst_41 = arith.constant dense<0.000000e+00> : vector<8x16xf32>
    %109 = tpu.matmul %108, %93, %cst_41 {dimension_numbers = #tpu.dot_dimension_numbers<[1], [0], [0], [1], [0, 0, 1, 1], [], []>} : vector<8x8xf32>, vector<8x16xf32>, vector<8x16xf32> -> vector<8x16xf32>
    %110 = tpu.concatenate %52, %71, %90, %109 in 1 : vector<8x16xf32>, vector<8x16xf32>, vector<8x16xf32>, vector<8x16xf32> -> vector<8x64xf32>
    %c0_42 = arith.constant 0 : index
    %c0_43 = arith.constant 0 : index
    %111 = vector.load %arg8[%c0_42, %c0_43] : memref<64x64xf32, #tpu.memory_space<vmem>>, vector<64x64xf32>
    %cst_44 = arith.constant dense<0.000000e+00> : vector<8x64xf32>
    %112 = tpu.matmul %110, %111, %cst_44 {dimension_numbers = #tpu.dot_dimension_numbers<[1], [0], [0], [1], [0, 0, 1, 1], [], []>} : vector<8x64xf32>, vector<64x64xf32>, vector<8x64xf32> -> vector<8x64xf32>
    %c0_45 = arith.constant 0 : index
    %c0_46 = arith.constant 0 : index
    %113 = vector.load %arg9[%c0_45, %c0_46] : memref<1x64xf32, #tpu.memory_space<vmem>>, vector<1x64xf32>
    %114 = vector.broadcast %113 : vector<1x64xf32> to vector<8x64xf32>
    %115 = arith.addf %112, %114 : vector<8x64xf32>
    %c0_47 = arith.constant 0 : index
    %c0_48 = arith.constant 0 : index
    %c0_49 = arith.constant 0 : index
    %116 = vector.load %arg10[%c0_47, %c0_48, %c0_49] : memref<1x8x64xf32, #tpu.memory_space<vmem>>, vector<1x8x64xf32>
    %117 = vector.shape_cast %116 : vector<1x8x64xf32> to vector<8x64xf32>
    %118 = vector.shape_cast %115 : vector<8x64xf32> to vector<1x8x64xf32>
    tpu.vector_store %arg10[%c0_47, %c0_48, %c0_49], %118 {strides = array<i32>} : memref<1x8x64xf32, #tpu.memory_space<vmem>>, vector<1x8x64xf32>,
    return
  }
  func.func @transform_0(%arg0: i32) -> (i32, i32, i32) {
    %c0_i32 = arith.constant 0 : i32
    %c0_i32_0 = arith.constant 0 : i32
    %c0_i32_1 = arith.constant 0 : i32
    return %arg0, %c0_i32, %c0_i32_0 : i32, i32, i32
  }
  func.func @transform_1(%arg0: i32) -> (i32, i32, i32) {
    %c0_i32 = arith.constant 0 : i32
    %c0_i32_0 = arith.constant 0 : i32
    %c0_i32_1 = arith.constant 0 : i32
    return %arg0, %c0_i32, %c0_i32_0 : i32, i32, i32
  }
  func.func @transform_2(%arg0: i32) -> (i32, i32) {
    %c0_i32 = arith.constant 0 : i32
    %c0_i32_0 = arith.constant 0 : i32
    %c0_i32_1 = arith.constant 0 : i32
    return %c0_i32, %c0_i32_0 : i32, i32
  }
  func.func @transform_3(%arg0: i32) -> (i32, i32) {
    %c0_i32 = arith.constant 0 : i32
    %c0_i32_0 = arith.constant 0 : i32
    %c0_i32_1 = arith.constant 0 : i32
    return %c0_i32, %c0_i32_0 : i32, i32
  }
  func.func @transform_4(%arg0: i32) -> (i32, i32) {
    %c0_i32 = arith.constant 0 : i32
    %c0_i32_0 = arith.constant 0 : i32
    %c0_i32_1 = arith.constant 0 : i32
    return %c0_i32, %c0_i32_0 : i32, i32
  }
  func.func @transform_5(%arg0: i32) -> (i32, i32) {
    %c0_i32 = arith.constant 0 : i32
    %c0_i32_0 = arith.constant 0 : i32
    %c0_i32_1 = arith.constant 0 : i32
    return %c0_i32, %c0_i32_0 : i32, i32
  }
  func.func @transform_6(%arg0: i32) -> (i32, i32) {
    %c0_i32 = arith.constant 0 : i32
    %c0_i32_0 = arith.constant 0 : i32
    %c0_i32_1 = arith.constant 0 : i32
    return %c0_i32, %c0_i32_0 : i32, i32
  }
  func.func @transform_7(%arg0: i32) -> (i32, i32) {
    %c0_i32 = arith.constant 0 : i32
    %c0_i32_0 = arith.constant 0 : i32
    %c0_i32_1 = arith.constant 0 : i32
    return %c0_i32, %c0_i32_0 : i32, i32
  }
  func.func @transform_8(%arg0: i32) -> (i32, i32) {
    %c0_i32 = arith.constant 0 : i32
    %c0_i32_0 = arith.constant 0 : i32
    %c0_i32_1 = arith.constant 0 : i32
    return %c0_i32, %c0_i32_0 : i32, i32
  }
  func.func @transform_9(%arg0: i32) -> (i32, i32, i32) {
    %c0_i32 = arith.constant 0 : i32
    %c0_i32_0 = arith.constant 0 : i32
    %c0_i32_1 = arith.constant 0 : i32
    return %arg0, %c0_i32, %c0_i32_0 : i32, i32, i32
  }
}

</mosaic_0001>

<llo_original>
// kernel: tpu_custom_call.1
$region0: #{tpu_custom_call.1}
  #allocation0 [shape = 'u32[]', space=smem, size = 0x4, offset = 0x4, fixed_abs, tag = 'smem constant byte address 0x4 - core index']
  #allocation1 [shape = 'u32[72,128]{1,0:T(1,128)}', space=vmem, size = 0x9000, scoped, tag = 'internal scratch']
  %s0 = inlined_call_operand.hbm [shape: f32[3,8,32], index: 0, kind: input, shape index: {}]
  %s1 = inlined_call_operand.hbm [shape: f32[3,1,8], index: 1, kind: input, shape index: {}]
  %s2 = inlined_call_operand.vmem [shape: f32[1,32], index: 2, kind: input, shape index: {}]
  %s3 = inlined_call_operand.vmem [shape: f32[1,32], index: 3, kind: input, shape index: {}]
  %s4 = inlined_call_operand.hbm [shape: f32[32,64], index: 4, kind: input, shape index: {}]
  %s5 = inlined_call_operand.hbm [shape: f32[32,64], index: 5, kind: input, shape index: {}]
  %s6 = inlined_call_operand.hbm [shape: f32[32,64], index: 6, kind: input, shape index: {}]
  %s7 = inlined_call_operand.hbm [shape: f32[64,64], index: 7, kind: input, shape index: {}]
  %s8 = inlined_call_operand.vmem [shape: f32[1,64], index: 8, kind: input, shape index: {}]
  %s9 = inlined_call_operand.hbm [shape: f32[3,8,64], index: 9, kind: output, shape index: {}]
  %s10 = sld [smem:[#allocation0]]
  $region93: #{tpu_custom_call.1} parent=0
    _
  %s12 = ssub.s32 1, %s10
  %s13 = scalar_select 0, %s12, %s10
  $region1: #{tpu_custom_call.1} parent=0
    #allocation2 [shape = 'u8[8192]{0}', space=vmem, size = 0x2000, scoped, tag = 'input window, operand 0']
    #allocation3 [shape = 's32[2]{0}', space=sflag, size = 0x8, scoped, tag = 'scoped memory for tpu_custom_call.1']
    #allocation4 [shape = 's32[2]{0}', space=sflag, size = 0x8, scoped, tag = 'scoped memory for tpu_custom_call.1']
    #allocation5 [shape = 'u8[1024]{0}', space=vmem, size = 0x400, scoped, tag = 'input window, operand 1']
    #allocation6 [shape = 's32[2]{0}', space=sflag, size = 0x8, scoped, tag = 'scoped memory for tpu_custom_call.1']
    #allocation7 [shape = 'u8[16384]{0}', space=vmem, size = 0x4000, scoped, tag = 'input window, operand 4, single buffered']
    #allocation8 [shape = 'u8[16384]{0}', space=vmem, size = 0x4000, scoped, tag = 'input window, operand 5, single buffered']
    #allocation9 [shape = 's32[1]{0}', space=sflag, size = 0x4, scoped, tag = 'scoped memory for tpu_custom_call.1']
    #allocation10 [shape = 'u8[16384]{0}', space=vmem, size = 0x4000, scoped, tag = 'input window, operand 6, single buffered']
    #allocation11 [shape = 'u8[32768]{0}', space=vmem, size = 0x8000, scoped, tag = 'input window, operand 7, single buffered']
    #allocation12 [shape = 's32[1]{0}', space=sflag, size = 0x4, scoped, tag = 'scoped memory for tpu_custom_call.1']
    #allocation13 [shape = 'u8[8192]{0}', space=vmem, size = 0x2000, scoped, tag = 'output window, operand 0']
    %14 = vsyncpa [#allocation3], 0
    %s15 = scalar_lea.sflag [#allocation3], 1
    %16 = vsyncpa %s15, 0
    %17 = vsyncpa [#allocation6], 0
    %s18 = scalar_lea.sflag [#allocation6], 1
    %19 = vsyncpa %s18, 0
    %20 = vsyncpa [#allocation9], 0
    %21 = vsyncpa [#allocation12], 0
    %22 = vsyncpa [#allocation4], 0
    %s23 = scalar_lea.sflag [#allocation4], 1
    %24 = vsyncpa %s23, 0
    loop: start=0, step=1, limit=5
    $region2: #{tpu_custom_call.1} parent=1 // loop_pre_header
      _
    $region3: #{tpu_custom_call.1} parent=1 // loop_header
      %s26 = sphi 0, %s30
      %p27 = scmp.ge.s32.totalorder %s26, 5
      %s36 = sphi 0, %s38
      %s39 = sphi 0, %s36
      %s40 = sphi 0, %s39
      %s56 = sphi 0, %s40
      %s62 = sphi 0, %s64
      %s65 = sphi 0, %s62
      %s66 = sphi 0, %s65
      %s82 = sphi 0, %s66
      %s86 = sphi 0, %s86
      %s88 = sphi 0, %s86
      %s89 = sphi 0, %s88
      %s103 = sphi 0, %s89
      %s107 = sphi 0, %s107
      %s109 = sphi 0, %s107
      %s110 = sphi 0, %s109
      %s124 = sphi 0, %s110
      %s128 = sphi 0, %s128
      %s130 = sphi 0, %s128
      %s131 = sphi 0, %s130
      %s145 = sphi 0, %s131
      %s149 = sphi 0, %s149
      %s151 = sphi 0, %s149
      %s152 = sphi 0, %s151
      %s166 = sphi 0, %s152
      %s170 = sphi 0, %s170
      %s172 = sphi 0, %s170
      %s173 = sphi 0, %s172
      %s187 = sphi 0, %s173
      %s191 = sphi 0, %s191
      %s193 = sphi 0, %s191
      %s194 = sphi 0, %s193
      %s208 = sphi 0, %s194
      %s212 = sphi 0, %s212
      %s214 = sphi 0, %s212
      %s215 = sphi 0, %s214
      %s229 = sphi 0, %s215
      %s235 = sphi 0, %s237
      %s238 = sphi 0, %s235
      %s239 = sphi 0, %s238
      %s255 = sphi 0, %s239
    $region4: #{tpu_custom_call.1} parent=1 // loop_header_branch
      %29 = sbr.rel (%p27) target = $region8
    $region5: #{tpu_custom_call.1} parent=1 // loop_body
      %s31 = ssub.s32 %s26, 1
      %s32 = ssub.s32 %s26, 2
      %s33 = sadd.s32 %s26, 1
      %s34 = ssub.s32 %s26, %s33
      %p35 = scmp.eq.s32.totalorder %s34, 0
      %s37 = sadd.s32 %s36, 1
      %s38 = scalar_select %p35, %s36, %s37
      %p41 = pneg %p35
      %p42 = scmp.eq.s32.totalorder %s26, 2
      %p43 = por %p41, %p42
      %p44 = scmp.ne.s32.totalorder %s36, %s39
      %p45 = scmp.eq.s32.totalorder %s26, 0
      %p46 = por %p44, %p45
      %p47 = scmp.ne.s32.totalorder %s36, %s39
      %p48 = scmp.eq.s32.totalorder %s31, 2
      %p49 = por %p47, %p48
      %p50 = scmp.ne.s32.totalorder %s39, %s40
      %p51 = scmp.eq.s32.totalorder %s31, 0
      %p52 = por %p50, %p51
      %p53 = scmp.ne.s32.totalorder %s39, %s40
      %p54 = scmp.eq.s32.totalorder %s32, 2
      %p55 = por %p53, %p54
      %p57 = scmp.ne.s32.totalorder %s40, %s56
      %p58 = scmp.eq.s32.totalorder %s32, 0
      %p59 = por %p57, %p58
      %s60 = ssub.s32 %s26, %s33
      %p61 = scmp.eq.s32.totalorder %s60, 0
      %s63 = sadd.s32 %s62, 1
      %s64 = scalar_select %p61, %s62, %s63
      %p67 = pneg %p61
      %p68 = scmp.eq.s32.totalorder %s26, 2
      %p69 = por %p67, %p68
      %p70 = scmp.ne.s32.totalorder %s62, %s65
      %p71 = scmp.eq.s32.totalorder %s26, 0
      %p72 = por %p70, %p71
      %p73 = scmp.ne.s32.totalorder %s62, %s65
      %p74 = scmp.eq.s32.totalorder %s31, 2
      %p75 = por %p73, %p74
      %p76 = scmp.ne.s32.totalorder %s65, %s66
      %p77 = scmp.eq.s32.totalorder %s31, 0
      %p78 = por %p76, %p77
      %p79 = scmp.ne.s32.totalorder %s65, %s66
      %p80 = scmp.eq.s32.totalorder %s32, 2
      %p81 = por %p79, %p80
      %p83 = scmp.ne.s32.totalorder %s66, %s82
      %p84 = scmp.eq.s32.totalorder %s32, 0
      %p85 = por %p83, %p84
      %s87 = sadd.s32 %s86, 1
      %p90 = scmp.eq.s32.totalorder %s26, 2
      %p91 = scmp.ne.s32.totalorder %s86, %s88
      %p92 = scmp.eq.s32.totalorder %s26, 0
      %p93 = por %p91, %p92
      %p94 = scmp.ne.s32.totalorder %s86, %s88
      %p95 = scmp.eq.s32.totalorder %s31, 2
      %p96 = por %p94, %p95
      %p97 = scmp.ne.s32.totalorder %s88, %s89
      %p98 = scmp.eq.s32.totalorder %s31, 0
      %p99 = por %p97, %p98
      %p100 = scmp.ne.s32.totalorder %s88, %s89
      %p101 = scmp.eq.s32.totalorder %s32, 2
      %p102 = por %p100, %p101
      %p104 = scmp.ne.s32.totalorder %s89, %s103
      %p105 = scmp.eq.s32.totalorder %s32, 0
      %p106 = por %p104, %p105
      %s108 = sadd.s32 %s107, 1
      %p111 = scmp.eq.s32.totalorder %s26, 2
      %p112 = scmp.ne.s32.totalorder %s107, %s109
      %p113 = scmp.eq.s32.totalorder %s26, 0
      %p114 = por %p112, %p113
      %p115 = scmp.ne.s32.totalorder %s107, %s109
      %p116 = scmp.eq.s32.totalorder %s31, 2
      %p117 = por %p115, %p116
      %p118 = scmp.ne.s32.totalorder %s109, %s110
      %p119 = scmp.eq.s32.totalorder %s31, 0
      %p120 = por %p118, %p119
      %p121 = scmp.ne.s32.totalorder %s109, %s110
      %p122 = scmp.eq.s32.totalorder %s32, 2
      %p123 = por %p121, %p122
      %p125 = scmp.ne.s32.totalorder %s110, %s124
      %p126 = scmp.eq.s32.totalorder %s32, 0
      %p127 = por %p125, %p126
      %s129 = sadd.s32 %s128, 1
      %p132 = scmp.eq.s32.totalorder %s26, 2
      %p133 = scmp.ne.s32.totalorder %s128, %s130
      %p134 = scmp.eq.s32.totalorder %s26, 0
      %p135 = por %p133, %p134
      %p136 = scmp.ne.s32.totalorder %s128, %s130
      %p137 = scmp.eq.s32.totalorder %s31, 2
      %p138 = por %p136, %p137
      %p139 = scmp.ne.s32.totalorder %s130, %s131
      %p140 = scmp.eq.s32.totalorder %s31, 0
      %p141 = por %p139, %p140
      %p142 = scmp.ne.s32.totalorder %s130, %s131
      %p143 = scmp.eq.s32.totalorder %s32, 2
      %p144 = por %p142, %p143
      %p146 = scmp.ne.s32.totalorder %s131, %s145
      %p147 = scmp.eq.s32.totalorder %s32, 0
      %p148 = por %p146, %p147
      %s150 = sadd.s32 %s149, 1
      %p153 = scmp.eq.s32.totalorder %s26, 2
      %p154 = scmp.ne.s32.totalorder %s149, %s151
      %p155 = scmp.eq.s32.totalorder %s26, 0
      %p156 = por %p154, %p155
      %p157 = scmp.ne.s32.totalorder %s149, %s151
      %p158 = scmp.eq.s32.totalorder %s31, 2
      %p159 = por %p157, %p158
      %p160 = scmp.ne.s32.totalorder %s151, %s152
      %p161 = scmp.eq.s32.totalorder %s31, 0
      %p162 = por %p160, %p161
      %p163 = scmp.ne.s32.totalorder %s151, %s152
      %p164 = scmp.eq.s32.totalorder %s32, 2
      %p165 = por %p163, %p164
      %p167 = scmp.ne.s32.totalorder %s152, %s166
      %p168 = scmp.eq.s32.totalorder %s32, 0
      %p169 = por %p167, %p168
      %s171 = sadd.s32 %s170, 1
      %p174 = scmp.eq.s32.totalorder %s26, 2
      %p175 = scmp.ne.s32.totalorder %s170, %s172
      %p176 = scmp.eq.s32.totalorder %s26, 0
      %p177 = por %p175, %p176
      %p178 = scmp.ne.s32.totalorder %s170, %s172
      %p179 = scmp.eq.s32.totalorder %s31, 2
      %p180 = por %p178, %p179
      %p181 = scmp.ne.s32.totalorder %s172, %s173
      %p182 = scmp.eq.s32.totalorder %s31, 0
      %p183 = por %p181, %p182
      %p184 = scmp.ne.s32.totalorder %s172, %s173
      %p185 = scmp.eq.s32.totalorder %s32, 2
      %p186 = por %p184, %p185
      %p188 = scmp.ne.s32.totalorder %s173, %s187
      %p189 = scmp.eq.s32.totalorder %s32, 0
      %p190 = por %p188, %p189
      %s192 = sadd.s32 %s191, 1
      %p195 = scmp.eq.s32.totalorder %s26, 2
      %p196 = scmp.ne.s32.totalorder %s191, %s193
      %p197 = scmp.eq.s32.totalorder %s26, 0
      %p198 = por %p196, %p197
      %p199 = scmp.ne.s32.totalorder %s191, %s193
      %p200 = scmp.eq.s32.totalorder %s31, 2
      %p201 = por %p199, %p200
      %p202 = scmp.ne.s32.totalorder %s193, %s194
      %p203 = scmp.eq.s32.totalorder %s31, 0
      %p204 = por %p202, %p203
      %p205 = scmp.ne.s32.totalorder %s193, %s194
      %p206 = scmp.eq.s32.totalorder %s32, 2
      %p207 = por %p205, %p206
      %p209 = scmp.ne.s32.totalorder %s194, %s208
      %p210 = scmp.eq.s32.totalorder %s32, 0
      %p211 = por %p209, %p210
      %s213 = sadd.s32 %s212, 1
      %p216 = scmp.eq.s32.totalorder %s26, 2
      %p217 = scmp.ne.s32.totalorder %s212, %s214
      %p218 = scmp.eq.s32.totalorder %s26, 0
      %p219 = por %p217, %p218
      %p220 = scmp.ne.s32.totalorder %s212, %s214
      %p221 = scmp.eq.s32.totalorder %s31, 2
      %p222 = por %p220, %p221
      %p223 = scmp.ne.s32.totalorder %s214, %s215
      %p224 = scmp.eq.s32.totalorder %s31, 0
      %p225 = por %p223, %p224
      %p226 = scmp.ne.s32.totalorder %s214, %s215
      %p227 = scmp.eq.s32.totalorder %s32, 2
      %p228 = por %p226, %p227
      %p230 = scmp.ne.s32.totalorder %s215, %s229
      %p231 = scmp.eq.s32.totalorder %s32, 0
      %p232 = por %p230, %p231
      %s233 = ssub.s32 %s26, %s33
      %p234 = scmp.eq.s32.totalorder %s233, 0
      %s236 = sadd.s32 %s235, 1
      %s237 = scalar_select %p234, %s235, %s236
      %p240 = pneg %p234
      %p241 = scmp.eq.s32.totalorder %s26, 2
      %p242 = por %p240, %p241
      %p243 = scmp.ne.s32.totalorder %s235, %s238
      %p244 = scmp.eq.s32.totalorder %s26, 0
      %p245 = por %p243, %p244
      %p246 = scmp.ne.s32.totalorder %s235, %s238
      %p247 = scmp.eq.s32.totalorder %s31, 2
      %p248 = por %p246, %p247
      %p249 = scmp.ne.s32.totalorder %s238, %s239
      %p250 = scmp.eq.s32.totalorder %s31, 0
      %p251 = por %p249, %p250
      %p252 = scmp.ne.s32.totalorder %s238, %s239
      %p253 = scmp.eq.s32.totalorder %s32, 2
      %p254 = por %p252, %p253
      %p256 = scmp.ne.s32.totalorder %s239, %s255
      %p257 = scmp.eq.s32.totalorder %s32, 0
      %p258 = por %p256, %p257
      %p259 = scmp.le.s32.totalorder 1, %s26
      %p260 = scmp.lt.s32.totalorder %s26, 4
      %p261 = pnand %p259, %p260
      %p262 = pneg %p261
      // Predicated region
      $region9: #{tpu_custom_call.1} parent=5 // pred_check
        _
      $region10: #{tpu_custom_call.1} parent=5 // pred_check_branch
        %264 = sbr.rel (%p261) target = $region12
      $region11: #{tpu_custom_call.1} parent=5 // pred_region
        %s265 = ssub.s32 %s26, 1
        // Predicated region
        $region13: #{tpu_custom_call.1} parent=11 // pred_check
          %p266 = pneg %p99
        $region14: #{tpu_custom_call.1} parent=11 // pred_check_branch
          %268 = sbr.rel (%p266) target = $region16
        $region15: #{tpu_custom_call.1} parent=11 // pred_region
          _
        $region16: #{tpu_custom_call.1} parent=11 // pred_fallthru
          _
        // Predicated region
        $region17: #{tpu_custom_call.1} parent=11 // pred_check
          %p269 = pneg %p120
        $region18: #{tpu_custom_call.1} parent=11 // pred_check_branch
          %271 = sbr.rel (%p269) target = $region20
        $region19: #{tpu_custom_call.1} parent=11 // pred_region
          _
        $region20: #{tpu_custom_call.1} parent=11 // pred_fallthru
          _
        // Predicated region
        $region21: #{tpu_custom_call.1} parent=11 // pred_check
          %p272 = pneg %p141
        $region22: #{tpu_custom_call.1} parent=11 // pred_check_branch
          %274 = sbr.rel (%p272) target = $region24
        $region23: #{tpu_custom_call.1} parent=11 // pred_region
          %276 = vsyncadd [#allocation6], 0
          %s277 = sshll.u32 %s4, 4
          %s278 = int_to_ptr.hbm [resolvable:$true] %s277
          %s279 = sshll.u32 [#allocation7], 4
          %s280 = int_to_ptr.vmem [resolvable:$true] %s279
          %285 = dma.hbm_to_vmem [thread:$0]  %s278, 512, %s280, [#allocation6], 128, 128, 8
        $region24: #{tpu_custom_call.1} parent=11 // pred_fallthru
          _
        // Predicated region
        $region25: #{tpu_custom_call.1} parent=11 // pred_check
          %p286 = pneg %p162
        $region26: #{tpu_custom_call.1} parent=11 // pred_check_branch
          %288 = sbr.rel (%p286) target = $region28
        $region27: #{tpu_custom_call.1} parent=11 // pred_region
          %290 = vsyncadd [#allocation9], 0
          %s291 = sshll.u32 %s5, 4
          %s292 = int_to_ptr.hbm [resolvable:$true] %s291
          %s293 = sshll.u32 [#allocation8], 4
          %s294 = int_to_ptr.vmem [resolvable:$true] %s293
          %299 = dma.hbm_to_vmem [thread:$0]  %s292, 512, %s294, [#allocation9], 128, 128, 8
        $region28: #{tpu_custom_call.1} parent=11 // pred_fallthru
          _
        // Predicated region
        $region29: #{tpu_custom_call.1} parent=11 // pred_check
          %p300 = pneg %p183
        $region30: #{tpu_custom_call.1} parent=11 // pred_check_branch
          %302 = sbr.rel (%p300) target = $region32
        $region31: #{tpu_custom_call.1} parent=11 // pred_region
          %304 = vsyncadd [#allocation9], 0
          %s305 = sshll.u32 %s6, 4
          %s306 = int_to_ptr.hbm [resolvable:$true] %s305
          %s307 = sshll.u32 [#allocation10], 4
          %s308 = int_to_ptr.vmem [resolvable:$true] %s307
          %313 = dma.hbm_to_vmem [thread:$0]  %s306, 512, %s308, [#allocation9], 128, 128, 8
        $region32: #{tpu_custom_call.1} parent=11 // pred_fallthru
          _
        // Predicated region
        $region33: #{tpu_custom_call.1} parent=11 // pred_check
          %p314 = pneg %p204
        $region34: #{tpu_custom_call.1} parent=11 // pred_check_branch
          %316 = sbr.rel (%p314) target = $region36
        $region35: #{tpu_custom_call.1} parent=11 // pred_region
          %318 = vsyncadd [#allocation12], 0
          %s319 = sshll.u32 %s7, 4
          %s320 = int_to_ptr.hbm [resolvable:$true] %s319
          %s321 = sshll.u32 [#allocation11], 4
          %s322 = int_to_ptr.vmem [resolvable:$true] %s321
          %327 = dma.hbm_to_vmem [thread:$0]  %s320, 1024, %s322, [#allocation12], 128, 128, 8
        $region36: #{tpu_custom_call.1} parent=11 // pred_fallthru
          _
        // Predicated region
        $region37: #{tpu_custom_call.1} parent=11 // pred_check
          %p328 = pneg %p225
        $region38: #{tpu_custom_call.1} parent=11 // pred_check_branch
          %330 = sbr.rel (%p328) target = $region40
        $region39: #{tpu_custom_call.1} parent=11 // pred_region
          _
        $region40: #{tpu_custom_call.1} parent=11 // pred_fallthru
          _
      $region12: #{tpu_custom_call.1} parent=5 // pred_fallthru
        _
      %p331 = scmp.lt.s32.totalorder %s26, 3
      // Predicated region
      $region41: #{tpu_custom_call.1} parent=5 // pred_check
        %p332 = pneg %p331
      $region42: #{tpu_custom_call.1} parent=5 // pred_check_branch
        %334 = sbr.rel (%p332) target = $region44
      $region43: #{tpu_custom_call.1} parent=5 // pred_region
        // Predicated region
        $region45: #{tpu_custom_call.1} parent=43 // pred_check
          %p335 = pneg %p46
        $region46: #{tpu_custom_call.1} parent=43 // pred_check_branch
          %337 = sbr.rel (%p335) target = $region48
        $region47: #{tpu_custom_call.1} parent=43 // pred_region
          %s338 = sand.u32 %s36, 1
          %s339 = scalar_lea.sflag [#allocation3], %s338
          %s340 = sand.u32 %s36, 1
          %s341 = smul.addr %s340, 8
          %s342 = scalar_lea.vmem [#allocation2], %s341
          %344 = vsyncadd %s339, 0
          %s345 = smul.addr %s26, 8
          %s346 = scalar_lea.hbm %s0, %s345
          %s348 = sshll.u32 %s346, 4
          %s349 = int_to_ptr.hbm [resolvable:$true] %s348
          %s350 = sshll.u32 %s342, 4
          %s351 = int_to_ptr.vmem [resolvable:$true] %s350
          %353 = dma.hbm_to_vmem [thread:$0]  %s349, 128, %s351, %s339
        $region48: #{tpu_custom_call.1} parent=43 // pred_fallthru
          _
        // Predicated region
        $region49: #{tpu_custom_call.1} parent=43 // pred_check
          %p354 = pneg %p72
        $region50: #{tpu_custom_call.1} parent=43 // pred_check_branch
          %356 = sbr.rel (%p354) target = $region52
        $region51: #{tpu_custom_call.1} parent=43 // pred_region
          %s357 = sand.u32 %s26, 1
          %s358 = scalar_lea.sflag [#allocation6], %s357
          %s359 = sand.u32 %s62, 1
          %s360 = scalar_lea.vmem [#allocation5], %s359
          %362 = vsyncadd %s358, 0
          %s363 = scalar_lea.hbm %s1, %s26
          %s365 = sshll.u32 %s363, 4
          %s366 = int_to_ptr.hbm [resolvable:$true] %s365
          %s367 = sshll.u32 %s360, 4
          %s368 = int_to_ptr.vmem [resolvable:$true] %s367
          %370 = dma.hbm_to_vmem [thread:$0]  %s366, 16, %s368, %s358
        $region52: #{tpu_custom_call.1} parent=43 // pred_fallthru
          _
      $region44: #{tpu_custom_call.1} parent=5 // pred_fallthru
        _
      %p371 = scmp.le.s32.totalorder 1, %s26
      %p372 = scmp.lt.s32.totalorder %s26, 4
      %p373 = pnand %p371, %p372
      %p374 = pneg %p373
      // Predicated region
      $region53: #{tpu_custom_call.1} parent=5 // pred_check
        _
      $region54: #{tpu_custom_call.1} parent=5 // pred_check_branch
        %376 = sbr.rel (%p373) target = $region56
      $region55: #{tpu_custom_call.1} parent=5 // pred_region
        %s377 = ssub.s32 %s26, 1
        %s378 = sand.u32 %s39, 1
        %s379 = scalar_lea.sflag [#allocation3], %s378
        %s380 = sand.u32 %s39, 1
        %s381 = smul.addr %s380, 8
        %s382 = scalar_lea.vmem [#allocation2], %s381
        // Predicated region
        $region57: #{tpu_custom_call.1} parent=55 // pred_check
          %p383 = pneg %p52
        $region58: #{tpu_custom_call.1} parent=55 // pred_check_branch
          %385 = sbr.rel (%p383) target = $region60
        $region59: #{tpu_custom_call.1} parent=55 // pred_region
          %387 = dma.done %s379, 128
        $region60: #{tpu_custom_call.1} parent=55 // pred_fallthru
          _
        %s388 = sand.u32 %s31, 1
        %s389 = scalar_lea.sflag [#allocation6], %s388
        %s390 = sand.u32 %s65, 1
        %s391 = scalar_lea.vmem [#allocation5], %s390
        // Predicated region
        $region61: #{tpu_custom_call.1} parent=55 // pred_check
          %p392 = pneg %p78
        $region62: #{tpu_custom_call.1} parent=55 // pred_check_branch
          %394 = sbr.rel (%p392) target = $region64
        $region63: #{tpu_custom_call.1} parent=55 // pred_region
          %396 = dma.done %s389, 16
        $region64: #{tpu_custom_call.1} parent=55 // pred_fallthru
          _
        // Predicated region
        $region65: #{tpu_custom_call.1} parent=55 // pred_check
          %p397 = pneg %p141
        $region66: #{tpu_custom_call.1} parent=55 // pred_check_branch
          %399 = sbr.rel (%p397) target = $region68
        $region67: #{tpu_custom_call.1} parent=55 // pred_region
          %401 = dma.done [#allocation6], 512
        $region68: #{tpu_custom_call.1} parent=55 // pred_fallthru
          _
        // Predicated region
        $region69: #{tpu_custom_call.1} parent=55 // pred_check
          %p402 = pneg %p162
        $region70: #{tpu_custom_call.1} parent=55 // pred_check_branch
          %404 = sbr.rel (%p402) target = $region72
        $region71: #{tpu_custom_call.1} parent=55 // pred_region
          %406 = dma.done [#allocation9], 512
        $region72: #{tpu_custom_call.1} parent=55 // pred_fallthru
          _
        // Predicated region
        $region73: #{tpu_custom_call.1} parent=55 // pred_check
          %p407 = pneg %p183
        $region74: #{tpu_custom_call.1} parent=55 // pred_check_branch
          %409 = sbr.rel (%p407) target = $region76
        $region75: #{tpu_custom_call.1} parent=55 // pred_region
          %411 = dma.done [#allocation9], 512
        $region76: #{tpu_custom_call.1} parent=55 // pred_fallthru
          _
        // Predicated region
        $region77: #{tpu_custom_call.1} parent=55 // pred_check
          %p412 = pneg %p204
        $region78: #{tpu_custom_call.1} parent=55 // pred_check_branch
          %414 = sbr.rel (%p412) target = $region80
        $region79: #{tpu_custom_call.1} parent=55 // pred_region
          %416 = dma.done [#allocation12], 1024
        $region80: #{tpu_custom_call.1} parent=55 // pred_fallthru
          _
        %s417 = sand.u32 %s39, 1
        %s418 = scalar_lea.sflag [#allocation3], %s417
        %s419 = sand.u32 %s39, 1
        %s420 = smul.addr %s419, 8
        %s421 = scalar_lea.vmem [#allocation2], %s420
        %p422 = pneg %p52
        %p423 = pneg %p49
        %s424 = sand.u32 %s31, 1
        %s425 = scalar_lea.sflag [#allocation6], %s424
        %s426 = sand.u32 %s65, 1
        %s427 = scalar_lea.vmem [#allocation5], %s426
        %p428 = pneg %p78
        %p429 = pneg %p75
        %p430 = pneg %p99
        %p431 = pneg %p96
        %p432 = pneg %p120
        %p433 = pneg %p117
        %p434 = pneg %p141
        %p435 = pneg %p138
        %p436 = pneg %p162
        %p437 = pneg %p159
        %p438 = pneg %p183
        %p439 = pneg %p180
        %p440 = pneg %p204
        %p441 = pneg %p201
        %p442 = pneg %p225
        %p443 = pneg %p222
        %p444 = pneg %p251
        %p445 = pneg %p248
        %s446 = sand.u32 %s238, 1
        %s447 = scalar_lea.sflag [#allocation4], %s446
        %s448 = sand.u32 %s238, 1
        %s449 = smul.addr %s448, 8
        %s450 = scalar_lea.vmem [#allocation13], %s449
        %v451 = vld [vmem:[%s382] sm:$0xff]
        %vm452 = vcmask 261120
        %v453 = vsel %vm452, %v451, 0.0
        %454 = vadd.xlane.f32.xlu0 %v453
        %v455 = vpop.xlane.xlu0 %454
        %v456 = vrcp.pop 32.0
        %v457 = vmul.f32 32.0, %v456
        %v458 = vsub.f32 1.0, %v457
        %v459 = vmul.f32 %v456, %v458
        %v460 = vadd.f32 %v456, %v459
        %vm461 = vweird.f32 %v456
        %v462 = vsel %vm461, %v456, %v460
        %v463 = vmul.f32 %v455, %v462
        %v464 = vsub.f32 %v451, %v463
        %v465 = vmul.f32 %v464, %v464
        %v466 = vsel %vm452, %v465, 0.0
        %467 = vadd.xlane.f32.xlu0 %v466
        %v468 = vpop.xlane.xlu0 %467
        %v469 = vmul.f32 %v468, %v462
        %v470 = vadd.f32 %v469, 1e-05
        %v471 = vrsqrt.pop %v470
        %v472 = vmul.f32 %v471, %v470
        %v473 = vmul.f32 %v472, %v471
        %v474 = vmul.f32 0.5, %v473
        %v475 = vsub.f32 1.5, %v474
        %v476 = vmul.f32 %v471, %v475
        %vm477 = vweird.f32 %v470
        %vm478 = vweird.f32 %v471
        %vm479 = vmor %vm477, %vm478
        %v480 = vsel %vm479, %v471, %v476
        %v481 = vmul.f32 %v464, %v480
        %v482 = vld [vmem:[%s2] sm:$0x1]
        %v484 = vperm.slane %v482, 0
        %v486 = vmul.f32 %v481, %v484
        %v487 = vld [vmem:[%s3] sm:$0x1]
        %v489 = vperm.slane %v487, 0
        %v491 = vadd.f32 %v486, %v489
        %v492 = vld [vmem:[#allocation7] sm:$0xff]
        %v493 = vld [vmem:[#allocation7 + $0x8] sm:$0xff]
        %v494 = vld [vmem:[#allocation7 + $0x10] sm:$0xff]
        %v495 = vld [vmem:[#allocation7 + $0x18] sm:$0xff]
        %v497 = vsel %vm452, %v491, 0
        %499 = vmatpush.msra.mxu0 0.0
        %500 = vmatpush.msra.mxu0 0.0
        %501 = vmatpush.msra.mxu0 0.0
        %502 = vmatpush.msra.mxu0 0.0
        %503 = vmatpush.msra.mxu0 0.0
        %504 = vmatpush.msra.mxu0 0.0
        %505 = vmatpush.msra.mxu0 0.0
        %506 = vmatpush.msra.mxu0 0.0
        %507 = vmatpush.msra.mxu0 0.0
        %508 = vmatpush.msra.mxu0 0.0
        %509 = vmatpush.msra.mxu0 0.0
        %510 = vmatpush.msra.mxu0 0.0
        %511 = vmatpush.msra.mxu0 %v495
        %512 = vmatpush.msra.mxu0 %v494
        %513 = vmatpush.msra.mxu0 %v493
        %514 = vmatpush.msra.mxu0 %v492
        %515 = vmatmul.f32.gmra.mxu0 %v497
        %v516 = vpop.f32.mrf.mxu0
        %v517 = vadd.f32 0.0, %v516
        %518 = vdwg.mxu0
        %v519 = vld [vmem:[#allocation8] sm:$0xff]
        %v520 = vld [vmem:[#allocation8 + $0x8] sm:$0xff]
        %v521 = vld [vmem:[#allocation8 + $0x10] sm:$0xff]
        %v522 = vld [vmem:[#allocation8 + $0x18] sm:$0xff]
        %523 = vmatpush.msra.mxu0 0.0
        %524 = vmatpush.msra.mxu0 0.0
        %525 = vmatpush.msra.mxu0 0.0
        %526 = vmatpush.msra.mxu0 0.0
        %527 = vmatpush.msra.mxu0 0.0
        %528 = vmatpush.msra.mxu0 0.0
        %529 = vmatpush.msra.mxu0 0.0
        %530 = vmatpush.msra.mxu0 0.0
        %531 = vmatpush.msra.mxu0 0.0
        %532 = vmatpush.msra.mxu0 0.0
        %533 = vmatpush.msra.mxu0 0.0
        %534 = vmatpush.msra.mxu0 0.0
        %535 = vmatpush.msra.mxu0 %v522
        %536 = vmatpush.msra.mxu0 %v521
        %537 = vmatpush.msra.mxu0 %v520
        %538 = vmatpush.msra.mxu0 %v519
        %539 = vmatmul.f32.gmra.mxu0 %v497
        %v540 = vpop.f32.mrf.mxu0
        %v541 = vadd.f32 0.0, %v540
        %542 = vdwg.mxu0
        %v543 = vld [vmem:[#allocation10] sm:$0xff]
        %v544 = vld [vmem:[#allocation10 + $0x8] sm:$0xff]
        %v545 = vld [vmem:[#allocation10 + $0x10] sm:$0xff]
        %v546 = vld [vmem:[#allocation10 + $0x18] sm:$0xff]
        %547 = vmatpush.msra.mxu0 0.0
        %548 = vmatpush.msra.mxu0 0.0
        %549 = vmatpush.msra.mxu0 0.0
        %550 = vmatpush.msra.mxu0 0.0
        %551 = vmatpush.msra.mxu0 0.0
        %552 = vmatpush.msra.mxu0 0.0
        %553 = vmatpush.msra.mxu0 0.0
        %554 = vmatpush.msra.mxu0 0.0
        %555 = vmatpush.msra.mxu0 0.0
        %556 = vmatpush.msra.mxu0 0.0
        %557 = vmatpush.msra.mxu0 0.0
        %558 = vmatpush.msra.mxu0 0.0
        %559 = vmatpush.msra.mxu0 %v546
        %560 = vmatpush.msra.mxu0 %v545
        %561 = vmatpush.msra.mxu0 %v544
        %562 = vmatpush.msra.mxu0 %v543
        %563 = vmatmul.f32.gmra.mxu0 %v497
        %v564 = vpop.f32.mrf.mxu0
        %v565 = vadd.f32 0.0, %v564
        %566 = vdwg.mxu0
        %v567 = vld [vmem:[%s391] sm:$0x1]
        %vm568 = vcmask 130048
        %v570 = vsel %vm568, %v517, 0
        %v573 = vsel %vm568, %v541, 0
        %575 = vmatpush.xpose.msra.mxu0 0.0
        %576 = vmatpush.xpose.msra.mxu0 0.0
        %577 = vmatpush.xpose.msra.mxu0 0.0
        %578 = vmatpush.xpose.msra.mxu0 0.0
        %579 = vmatpush.xpose.msra.mxu0 0.0
        %580 = vmatpush.xpose.msra.mxu0 0.0
        %581 = vmatpush.xpose.msra.mxu0 0.0
        %582 = vmatpush.xpose.msra.mxu0 0.0
        %583 = vmatpush.xpose.msra.mxu0 0.0
        %584 = vmatpush.xpose.msra.mxu0 0.0
        %585 = vmatpush.xpose.msra.mxu0 0.0
        %586 = vmatpush.xpose.msra.mxu0 0.0
        %587 = vmatpush.xpose.msra.mxu0 0.0
        %588 = vmatpush.xpose.msra.mxu0 0.0
        %589 = vmatpush.xpose.msra.mxu0 0.0
        %590 = vmatpush.xpose.msra.mxu0 %v573
        %591 = vmatmul.f32.gmra.mxu0 %v570
        %v592 = vpop.f32.mrf.mxu0
        %v593 = vadd.f32 0.0, %v592
        %594 = vdwg.mxu0
        %v595 = vmul.f32 %v593, 0.25
        %v597 = vperm.slane %v567, 0
        %v599 = vadd.f32 %v595, %v597
        %vm600 = vcmask 64512
        %v601 = vsel %vm600, %v599, -inf
        %602 = vmax.xlane.f32.xlu0 %v601
        %v603 = vpop.xlane.xlu0 %602
        %v604 = vsub.f32 %v599, %v603
        %v605 = vmul.f32 %v604, 1.442695
        %v606 = vpow.pop %v605
        %v607 = vsel %vm600, %v606, 0.0
        %608 = vadd.xlane.f32.xlu0 %v607
        %v609 = vpop.xlane.xlu0 %608
        %v610 = vrcp.pop %v609
        %v611 = vmul.f32 %v606, %v610
        %v613 = vsel %vm600, %v611, 0
        %615 = vmatpush.msra.mxu0 0.0
        %616 = vmatpush.msra.mxu0 0.0
        %617 = vmatpush.msra.mxu0 0.0
        %618 = vmatpush.msra.mxu0 0.0
        %619 = vmatpush.msra.mxu0 0.0
        %620 = vmatpush.msra.mxu0 0.0
        %621 = vmatpush.msra.mxu0 0.0
        %622 = vmatpush.msra.mxu0 0.0
        %623 = vmatpush.msra.mxu0 0.0
        %624 = vmatpush.msra.mxu0 0.0
        %625 = vmatpush.msra.mxu0 0.0
        %626 = vmatpush.msra.mxu0 0.0
        %627 = vmatpush.msra.mxu0 0.0
        %628 = vmatpush.msra.mxu0 0.0
        %629 = vmatpush.msra.mxu0 0.0
        %630 = vmatpush.msra.mxu0 %v565
        %631 = vmatmul.f32.gmra.mxu0 %v613
        %v632 = vpop.f32.mrf.mxu0
        %v633 = vadd.f32 0.0, %v632
        %634 = vdwg.mxu0
        %635 = vrot.lane.b32.xlu0 %v517, 112
        %v636 = vpop.permute.xlu0 %635
        %637 = vrot.lane.b32.xlu0 %v541, 112
        %v638 = vpop.permute.xlu0 %637
        %v639 = vsel %vm568, %v636, 0
        %v641 = vsel %vm568, %v638, 0
        %643 = vmatpush.xpose.msra.mxu0 0.0
        %644 = vmatpush.xpose.msra.mxu0 0.0
        %645 = vmatpush.xpose.msra.mxu0 0.0
        %646 = vmatpush.xpose.msra.mxu0 0.0
        %647 = vmatpush.xpose.msra.mxu0 0.0
        %648 = vmatpush.xpose.msra.mxu0 0.0
        %649 = vmatpush.xpose.msra.mxu0 0.0
        %650 = vmatpush.xpose.msra.mxu0 0.0
        %651 = vmatpush.xpose.msra.mxu0 0.0
        %652 = vmatpush.xpose.msra.mxu0 0.0
        %653 = vmatpush.xpose.msra.mxu0 0.0
        %654 = vmatpush.xpose.msra.mxu0 0.0
        %655 = vmatpush.xpose.msra.mxu0 0.0
        %656 = vmatpush.xpose.msra.mxu0 0.0
        %657 = vmatpush.xpose.msra.mxu0 0.0
        %658 = vmatpush.xpose.msra.mxu0 %v641
        %659 = vmatmul.f32.gmra.mxu0 %v639
        %v660 = vpop.f32.mrf.mxu0
        %v661 = vadd.f32 0.0, %v660
        %662 = vdwg.mxu0
        %v663 = vmul.f32 %v661, 0.25
        %v664 = vadd.f32 %v663, %v597
        %v665 = vsel %vm600, %v664, -inf
        %666 = vmax.xlane.f32.xlu0 %v665
        %v667 = vpop.xlane.xlu0 %666
        %v668 = vsub.f32 %v664, %v667
        %v669 = vmul.f32 %v668, 1.442695
        %v670 = vpow.pop %v669
        %v671 = vsel %vm600, %v670, 0.0
        %672 = vadd.xlane.f32.xlu0 %v671
        %v673 = vpop.xlane.xlu0 %672
        %v674 = vrcp.pop %v673
        %v675 = vmul.f32 %v670, %v674
        %677 = vrot.lane.b32.xlu0 %v565, 112
        %v678 = vpop.permute.xlu0 %677
        %v681 = vsel %vm600, %v675, 0
        %683 = vmatpush.msra.mxu0 0.0
        %684 = vmatpush.msra.mxu0 0.0
        %685 = vmatpush.msra.mxu0 0.0
        %686 = vmatpush.msra.mxu0 0.0
        %687 = vmatpush.msra.mxu0 0.0
        %688 = vmatpush.msra.mxu0 0.0
        %689 = vmatpush.msra.mxu0 0.0
        %690 = vmatpush.msra.mxu0 0.0
        %691 = vmatpush.msra.mxu0 0.0
        %692 = vmatpush.msra.mxu0 0.0
        %693 = vmatpush.msra.mxu0 0.0
        %694 = vmatpush.msra.mxu0 0.0
        %695 = vmatpush.msra.mxu0 0.0
        %696 = vmatpush.msra.mxu0 0.0
        %697 = vmatpush.msra.mxu0 0.0
        %698 = vmatpush.msra.mxu0 %v678
        %699 = vmatmul.f32.gmra.mxu0 %v681
        %v700 = vpop.f32.mrf.mxu0
        %v701 = vadd.f32 0.0, %v700
        %702 = vdwg.mxu0
        %703 = vrot.lane.b32.xlu0 %v517, 96
        %v704 = vpop.permute.xlu0 %703
        %705 = vrot.lane.b32.xlu0 %v541, 96
        %v706 = vpop.permute.xlu0 %705
        %v707 = vsel %vm568, %v704, 0
        %v709 = vsel %vm568, %v706, 0
        %711 = vmatpush.xpose.msra.mxu0 0.0
        %712 = vmatpush.xpose.msra.mxu0 0.0
        %713 = vmatpush.xpose.msra.mxu0 0.0
        %714 = vmatpush.xpose.msra.mxu0 0.0
        %715 = vmatpush.xpose.msra.mxu0 0.0
        %716 = vmatpush.xpose.msra.mxu0 0.0
        %717 = vmatpush.xpose.msra.mxu0 0.0
        %718 = vmatpush.xpose.msra.mxu0 0.0
        %719 = vmatpush.xpose.msra.mxu0 0.0
        %720 = vmatpush.xpose.msra.mxu0 0.0
        %721 = vmatpush.xpose.msra.mxu0 0.0
        %722 = vmatpush.xpose.msra.mxu0 0.0
        %723 = vmatpush.xpose.msra.mxu0 0.0
        %724 = vmatpush.xpose.msra.mxu0 0.0
        %725 = vmatpush.xpose.msra.mxu0 0.0
        %726 = vmatpush.xpose.msra.mxu0 %v709
        %727 = vmatmul.f32.gmra.mxu0 %v707
        %v728 = vpop.f32.mrf.mxu0
        %v729 = vadd.f32 0.0, %v728
        %730 = vdwg.mxu0
        %v731 = vmul.f32 %v729, 0.25
        %v732 = vadd.f32 %v731, %v597
        %v733 = vsel %vm600, %v732, -inf
        %734 = vmax.xlane.f32.xlu0 %v733
        %v735 = vpop.xlane.xlu0 %734
        %v736 = vsub.f32 %v732, %v735
        %v737 = vmul.f32 %v736, 1.442695
        %v738 = vpow.pop %v737
        %v739 = vsel %vm600, %v738, 0.0
        %740 = vadd.xlane.f32.xlu0 %v739
        %v741 = vpop.xlane.xlu0 %740
        %v742 = vrcp.pop %v741
        %v743 = vmul.f32 %v738, %v742
        %744 = vrot.lane.b32.xlu0 %v565, 96
        %v745 = vpop.permute.xlu0 %744
        %v748 = vsel %vm600, %v743, 0
        %750 = vmatpush.msra.mxu0 0.0
        %751 = vmatpush.msra.mxu0 0.0
        %752 = vmatpush.msra.mxu0 0.0
        %753 = vmatpush.msra.mxu0 0.0
        %754 = vmatpush.msra.mxu0 0.0
        %755 = vmatpush.msra.mxu0 0.0
        %756 = vmatpush.msra.mxu0 0.0
        %757 = vmatpush.msra.mxu0 0.0
        %758 = vmatpush.msra.mxu0 0.0
        %759 = vmatpush.msra.mxu0 0.0
        %760 = vmatpush.msra.mxu0 0.0
        %761 = vmatpush.msra.mxu0 0.0
        %762 = vmatpush.msra.mxu0 0.0
        %763 = vmatpush.msra.mxu0 0.0
        %764 = vmatpush.msra.mxu0 0.0
        %765 = vmatpush.msra.mxu0 %v745
        %766 = vmatmul.f32.gmra.mxu0 %v748
        %v767 = vpop.f32.mrf.mxu0
        %v768 = vadd.f32 0.0, %v767
        %769 = vdwg.mxu0
        %770 = vrot.lane.b32.xlu0 %v517, 80
        %v771 = vpop.permute.xlu0 %770
        %772 = vrot.lane.b32.xlu0 %v541, 80
        %v773 = vpop.permute.xlu0 %772
        %v774 = vsel %vm568, %v771, 0
        %v776 = vsel %vm568, %v773, 0
        %778 = vmatpush.xpose.msra.mxu0 0.0
        %779 = vmatpush.xpose.msra.mxu0 0.0
        %780 = vmatpush.xpose.msra.mxu0 0.0
        %781 = vmatpush.xpose.msra.mxu0 0.0
        %782 = vmatpush.xpose.msra.mxu0 0.0
        %783 = vmatpush.xpose.msra.mxu0 0.0
        %784 = vmatpush.xpose.msra.mxu0 0.0
        %785 = vmatpush.xpose.msra.mxu0 0.0
        %786 = vmatpush.xpose.msra.mxu0 0.0
        %787 = vmatpush.xpose.msra.mxu0 0.0
        %788 = vmatpush.xpose.msra.mxu0 0.0
        %789 = vmatpush.xpose.msra.mxu0 0.0
        %790 = vmatpush.xpose.msra.mxu0 0.0
        %791 = vmatpush.xpose.msra.mxu0 0.0
        %792 = vmatpush.xpose.msra.mxu0 0.0
        %793 = vmatpush.xpose.msra.mxu0 %v776
        %794 = vmatmul.f32.gmra.mxu0 %v774
        %v795 = vpop.f32.mrf.mxu0
        %v796 = vadd.f32 0.0, %v795
        %797 = vdwg.mxu0
        %v798 = vmul.f32 %v796, 0.25
        %v799 = vadd.f32 %v798, %v597
        %v800 = vsel %vm600, %v799, -inf
        %801 = vmax.xlane.f32.xlu0 %v800
        %v802 = vpop.xlane.xlu0 %801
        %v803 = vsub.f32 %v799, %v802
        %v804 = vmul.f32 %v803, 1.442695
        %v805 = vpow.pop %v804
        %v806 = vsel %vm600, %v805, 0.0
        %807 = vadd.xlane.f32.xlu0 %v806
        %v808 = vpop.xlane.xlu0 %807
        %v809 = vrcp.pop %v808
        %v810 = vmul.f32 %v805, %v809
        %811 = vrot.lane.b32.xlu0 %v565, 80
        %v812 = vpop.permute.xlu0 %811
        %v815 = vsel %vm600, %v810, 0
        %817 = vmatpush.msra.mxu0 0.0
        %818 = vmatpush.msra.mxu0 0.0
        %819 = vmatpush.msra.mxu0 0.0
        %820 = vmatpush.msra.mxu0 0.0
        %821 = vmatpush.msra.mxu0 0.0
        %822 = vmatpush.msra.mxu0 0.0
        %823 = vmatpush.msra.mxu0 0.0
        %824 = vmatpush.msra.mxu0 0.0
        %825 = vmatpush.msra.mxu0 0.0
        %826 = vmatpush.msra.mxu0 0.0
        %827 = vmatpush.msra.mxu0 0.0
        %828 = vmatpush.msra.mxu0 0.0
        %829 = vmatpush.msra.mxu0 0.0
        %830 = vmatpush.msra.mxu0 0.0
        %831 = vmatpush.msra.mxu0 0.0
        %832 = vmatpush.msra.mxu0 %v812
        %833 = vmatmul.f32.gmra.mxu0 %v815
        %v834 = vpop.f32.mrf.mxu0
        %v835 = vadd.f32 0.0, %v834
        %836 = vdwg.mxu0
        %838 = vrot.lane.b32.xlu0 %v701, 16
        %v839 = vpop.permute.xlu0 %838
        %842 = vrot.lane.b32.xlu0 %v768, 32
        %v843 = vpop.permute.xlu0 %842
        %846 = vrot.lane.b32.xlu0 %v835, 48
        %v847 = vpop.permute.xlu0 %846
        %v849 = vsel %vm568, %v633, %v839
        %v850 = vsel %vm452, %v849, %v843
        %vm851 = vcmask 392192
        %v852 = vsel %vm851, %v850, %v847
        %v853 = vld [vmem:[#allocation11] sm:$0xff]
        %v854 = vld [vmem:[#allocation11 + $0x8] sm:$0xff]
        %v855 = vld [vmem:[#allocation11 + $0x10] sm:$0xff]
        %v856 = vld [vmem:[#allocation11 + $0x18] sm:$0xff]
        %v857 = vld [vmem:[#allocation11 + $0x20] sm:$0xff]
        %v858 = vld [vmem:[#allocation11 + $0x28] sm:$0xff]
        %v859 = vld [vmem:[#allocation11 + $0x30] sm:$0xff]
        %v860 = vld [vmem:[#allocation11 + $0x38] sm:$0xff]
        %v861 = vld [vmem:[%s8] sm:$0x1]
        %v863 = vperm.slane %v861, 0
        %vm865 = vcmask 523264
        %v867 = vsel %vm865, %v852, 0
        %869 = vmatpush.msra.mxu0 0.0
        %870 = vmatpush.msra.mxu0 0.0
        %871 = vmatpush.msra.mxu0 0.0
        %872 = vmatpush.msra.mxu0 0.0
        %873 = vmatpush.msra.mxu0 0.0
        %874 = vmatpush.msra.mxu0 0.0
        %875 = vmatpush.msra.mxu0 0.0
        %876 = vmatpush.msra.mxu0 0.0
        %877 = vmatpush.msra.mxu0 %v860
        %878 = vmatpush.msra.mxu0 %v859
        %879 = vmatpush.msra.mxu0 %v858
        %880 = vmatpush.msra.mxu0 %v857
        %881 = vmatpush.msra.mxu0 %v856
        %882 = vmatpush.msra.mxu0 %v855
        %883 = vmatpush.msra.mxu0 %v854
        %884 = vmatpush.msra.mxu0 %v853
        %885 = vmatmul.f32.gmra.mxu0 %v867
        %v886 = vpop.f32.mrf.mxu0
        %v887 = vadd.f32 %v863, %v886
        %888 = vdwg.mxu0
        %889 = vst.msk [vmem:[%s450] sm:$0xff] %vm865, %v887
        %s890 = sand.u32 %s238, 1
        %s891 = scalar_lea.sflag [#allocation4], %s890
        %s892 = sand.u32 %s238, 1
        %s893 = smul.addr %s892, 8
        %s894 = scalar_lea.vmem [#allocation13], %s893
        // Predicated region
        $region81: #{tpu_custom_call.1} parent=55 // pred_check
          %p895 = pneg %p248
        $region82: #{tpu_custom_call.1} parent=55 // pred_check_branch
          %897 = sbr.rel (%p895) target = $region84
        $region83: #{tpu_custom_call.1} parent=55 // pred_region
          %899 = vsyncadd %s891, 0
          %s900 = smul.addr %s31, 8
          %s901 = scalar_lea.hbm %s9, %s900
          %s903 = sshll.u32 %s894, 4
          %s904 = int_to_ptr.vmem [resolvable:$true] %s903
          %s905 = sshll.u32 %s901, 4
          %s906 = int_to_ptr.hbm [resolvable:$true] %s905
          %908 = dma.vmem_to_hbm [thread:$0]  %s904, 128, %s906, %s891
        $region84: #{tpu_custom_call.1} parent=55 // pred_fallthru
          _
      $region56: #{tpu_custom_call.1} parent=5 // pred_fallthru
        _
      %p909 = scmp.le.s32.totalorder 2, %s26
      // Predicated region
      $region85: #{tpu_custom_call.1} parent=5 // pred_check
        %p910 = pneg %p909
      $region86: #{tpu_custom_call.1} parent=5 // pred_check_branch
        %912 = sbr.rel (%p910) target = $region88
      $region87: #{tpu_custom_call.1} parent=5 // pred_region
        %s913 = ssub.s32 %s26, 2
        // Predicated region
        $region89: #{tpu_custom_call.1} parent=87 // pred_check
          %p914 = pneg %p254
        $region90: #{tpu_custom_call.1} parent=87 // pred_check_branch
          %916 = sbr.rel (%p914) target = $region92
        $region91: #{tpu_custom_call.1} parent=87 // pred_region
          %s917 = sand.u32 %s239, 1
          %s918 = scalar_lea.sflag [#allocation4], %s917
          %s919 = sand.u32 %s239, 1
          %s920 = smul.addr %s919, 8
          %s921 = scalar_lea.vmem [#allocation13], %s920
          %923 = dma.done %s918, 128
        $region92: #{tpu_custom_call.1} parent=87 // pred_fallthru
          _
      $region88: #{tpu_custom_call.1} parent=5 // pred_fallthru
        _
    $region6: #{tpu_custom_call.1} parent=1 // loop_footer
      %s30 = sadd.s32 1, %s26
    $region7: #{tpu_custom_call.1} parent=1 // loop_footer_branch
      %25 = sbr.rel target = $region3
    $region8: #{tpu_custom_call.1} parent=1 // loop_exit
      _
    %924 = vsyncpa [#allocation3], 1
    %s925 = scalar_lea.sflag [#allocation3], 1
    %926 = vsyncpa %s925, 1
    %927 = vsyncpa [#allocation6], 1
    %s928 = scalar_lea.sflag [#allocation6], 1
    %929 = vsyncpa %s928, 1
    %930 = vsyncpa [#allocation9], 1
    %931 = vsyncpa [#allocation12], 1
    %932 = vsyncpa [#allocation4], 1
    %s933 = scalar_lea.sflag [#allocation4], 1
    %934 = vsyncpa %s933, 1

</llo_original>
